<compile_context>
chip_gen: v7x
topology: tpu7x:2x2x1
jax: 0.10.0
libtpu: 0.0.40
codegen_flags: <defaults>
</compile_context>

<pallas_src>
import functools

import numpy as np

import jax
import jax.numpy as jnp
from jax import lax
from jax.experimental import pallas as pl
from jax.experimental.pallas import tpu as pltpu


def _cnndst_kernel(x_ref, w_ref, o_ref, *, n_levels):
    """Fully-unrolled binary tree of 2x2 / stride-2 convolutions, lane-dense.

    x_ref : (B_tile, 4**n_levels) f32 VMEM -- Morton-flattened images (1/row)
    w_ref : (8,) f32 SMEM                  -- [q0_00,q0_01,q0_10,q0_11,
                                               q1_00,q1_01,q1_10,q1_11]
    o_ref : (B_tile, out_lanes) f32 VMEM   -- leaves live in lanes [0, 2^N)
    """
    L = 4 ** n_levels
    rows = x_ref.shape[0]

    # Preamble: hoist the 8 SMEM scalar reads out of the unrolled level loop.
    w00, w01, w02, w03 = w_ref[0], w_ref[1], w_ref[2], w_ref[3]
    w10, w11, w12, w13 = w_ref[4], w_ref[5], w_ref[6], w_ref[7]

    lane = lax.broadcasted_iota(jnp.int32, (rows, L), dimension=1)

    def _roll(v, shift):
        shift = shift % L
        if shift == 0:
            return v
        if L % 128 == 0:
            return pltpu.roll(v, shift, v.ndim - 1)   # XLU lane rotation
        return jnp.roll(v, shift, axis=-1)            # small-N fallback

    s = x_ref[...]                                    # (rows, L), Morton order
    # Invariant before level l0+1: the item with branch bits (b_{l0}..b_1) of
    # Morton pixel k lives at lane 4^l0 * k + sum_m b_m * 2^(m-1).
    for l0 in range(n_levels):
        step = 4 ** l0                                # lane distance between taps
        # Incremental 4-tap accumulation: at most ~4 (rows, L) vectors live.
        t = s
        u0 = w00 * t
        u1 = w10 * t
        t = _roll(t, -step)                           # tap (0, 1)
        u0 = u0 + w01 * t
        u1 = u1 + w11 * t
        t = _roll(t, -step)                           # tap (1, 0)
        u0 = u0 + w02 * t
        u1 = u1 + w12 * t
        t = _roll(t, -step)                           # tap (1, 1)
        u0 = u0 + w03 * t
        u1 = u1 + w13 * t
        # Pack branch-1 results into the lane slots freed by the 4->1
        # reduction: the branch bit of level l0+1 lands on lane bit l0, so the
        # final lane index equals the sorted-tag position of the PyTorch module.
        take_b1 = (lane & (1 << l0)) != 0
        s = jnp.where(take_b1, _roll(u1, 2 ** l0), u0)

    # Leaves occupy lanes [0, 2^N) in sorted-tag order; store a lane-dense slab
    # and slice to 2^N in the (jitted) wrapper.
    o_ref[...] = s[:, : o_ref.shape[-1]]


def _morton_perm(n_levels):
    """perm[lane] = row-major flat pixel index whose Morton (Z) code is `lane`.

    Lane bits (MSB -> LSB) are r_{n-1} c_{n-1} ... r_0 c_0, so at every tree
    level the 4 conv taps of an output pixel are 4 equally spaced lanes.
    """
    lanes = np.arange(4 ** n_levels)
    r = np.zeros_like(lanes)
    c = np.zeros_like(lanes)
    for k in range(n_levels):
        c |= ((lanes >> (2 * k)) & 1) << k
        r |= ((lanes >> (2 * k + 1)) & 1) << k
    return (r * (2 ** n_levels) + c).astype(np.int32)


@functools.partial(jax.jit, static_argnums=(1,))
def cnndst_forward(M, n_levels, q0_weight, q1_weight):
    """Pallas/JAX equivalent of CNNDST(n_levels).forward(M).

    M : [B, 1, 2^N, 2^N]  ->  [B, 2^N, 1, 1, 1]  (leaves in sorted-tag order).
    """
    B, C, H, W = M.shape
    assert C == 1, "module uses Conv2d(1, 1, ...): single input channel"
    assert H == W == 2 ** n_levels
    # TODO(synk): for n_levels > ~5 the (B_tile, 4^N) working row outgrows the
    # 64-vreg file; a lane-tiled multi-pass variant would be needed there.
    L = 4 ** n_levels
    n_leaves = 2 ** n_levels

    # Morton (Z-order) flatten as a static-permutation gather (fuses under jit).
    perm = jnp.asarray(_morton_perm(n_levels))
    x = M.astype(jnp.float32).reshape(B, L)[:, perm]

    # Batch rides the sublane axis.  B <= 8: one full-array block.  Larger B:
    # 8-row tiles over a "parallel" grid axis (sharded across TCs on v7x).
    b_tile = B if B <= 8 else 8
    b_pad = ((B + b_tile - 1) // b_tile) * b_tile
    if b_pad != B:
        x = jnp.pad(x, ((0, b_pad - B), (0, 0)))

    # Both 2x2 kernels as one flat (8,) f32 SMEM vector.
    w = jnp.concatenate(
        [q0_weight.reshape(-1), q1_weight.reshape(-1)]).astype(jnp.float32)

    # Lane-dense output slab (avoids a masked sub-128-lane store when possible).
    out_lanes = min(max(n_leaves, 128), L)

    kernel = functools.partial(_cnndst_kernel, n_levels=n_levels)
    leaves = pl.pallas_call(
        kernel,
        out_shape=jax.ShapeDtypeStruct((b_pad, out_lanes), jnp.float32),
        grid=(b_pad // b_tile,),
        in_specs=[
            pl.BlockSpec((b_tile, L), lambda i: (i, 0)),
            pl.BlockSpec(memory_space=pltpu.MemorySpace.SMEM),
        ],
        out_specs=pl.BlockSpec((b_tile, out_lanes), lambda i: (i, 0)),
        compiler_params=pltpu.CompilerParams(
            dimension_semantics=("parallel",)),
        cost_estimate=pl.CostEstimate(
            flops=15 * L * n_levels * b_pad,
            transcendentals=0,
            bytes_accessed=4 * (b_pad * L + b_pad * out_lanes + 8),
        ),
    )(x, w)

    # PyTorch output layout: m.permute(1, 0, 2, 3, 4) -> [B, 2^N, 1, 1, 1]
    return leaves[:B, :n_leaves].reshape(B, n_leaves, 1, 1, 1)


def _ref_forward(M, n_levels, k0, k1):
    """Pure-numpy re-implementation of the PyTorch forward (for verification)."""

    def conv2x2_s2(x, k):                              # x: (B, 1, H, W)
        return (k[0, 0] * x[:, :, 0::2, 0::2] + k[0, 1] * x[:, :, 0::2, 1::2]
                + k[1, 0] * x[:, :, 1::2, 0::2] + k[1, 1] * x[:, :, 1::2, 1::2])

    items = [(M, "")]
    for _ in range(n_levels):
        items = [p for t, tag in items
                 for p in ((conv2x2_s2(t, k0), "0" + tag),
                           (conv2x2_s2(t, k1), "1" + tag))]
    items.sort(key=lambda e: e[1])
    m = np.stack([t for t, _ in items])                # (2^N, B, 1, 1, 1)
    return np.transpose(m, (1, 0, 2, 3, 4))            # (B, 2^N, 1, 1, 1)


if __name__ == "__main__":
    N = 4
    H = 2 ** N  # 16

    key = jax.random.PRNGKey(0)
    M = jax.random.uniform(key, (2, 1, H, H), dtype=jnp.float32)

    # Deterministic parameters, exactly as in h_module.__init__
    # (torch weight shape (1,1,2,2); we keep the inner (2,2) kernel).
    q0_w = jnp.array([[1.0, 1.0], [1.0, 0.0]], dtype=jnp.float32)
    q1_w = jnp.array([[0.0, 0.0], [0.0, 1.0]], dtype=jnp.float32)

    out = jax.block_until_ready(cnndst_forward(M, N, q0_w, q1_w))
    ref = _ref_forward(np.asarray(M), N, np.asarray(q0_w), np.asarray(q1_w))
    np.testing.assert_allclose(np.asarray(out), ref, rtol=1e-5, atol=1e-5)

    # Second check: batch > 8 exercises batch padding + the multi-step
    # "parallel" grid path.
    M2 = jax.random.uniform(jax.random.PRNGKey(1), (11, 1, H, H),
                            dtype=jnp.float32)
    out2 = jax.block_until_ready(cnndst_forward(M2, N, q0_w, q1_w))
    ref2 = _ref_forward(np.asarray(M2), N, np.asarray(q0_w), np.asarray(q1_w))
    np.testing.assert_allclose(np.asarray(out2), ref2, rtol=1e-5, atol=1e-5)

    print("KERNEL_OK")
</pallas_src>

<mosaic_0001>
module attributes {stable_mosaic.version = 11 : i64} {
  func.func @_cnndst_kernel(%arg0: i32, %arg1: memref<2x256xf32, #tpu.memory_space<vmem>>, %arg2: memref<8xf32, #tpu.memory_space<smem>>, %arg3: memref<2x128xf32, #tpu.memory_space<vmem>>) attributes {dimension_semantics = [#tpu.dimension_semantics<parallel>], iteration_bounds = array<i64: 1>, scalar_prefetch = 0 : i64, scratch_operands = 0 : i64, tpu.core_type = #tpu.core_type<tc>, window_params = [{transform_indices = @transform_0, window_bounds = array<i64: 2, 256>}, {transform_indices = @transform_1, window_bounds = array<i64: 8>}, {transform_indices = @transform_2, window_bounds = array<i64: 2, 128>}]} {
    %c0 = arith.constant 0 : index
    %0 = memref.load %arg2[%c0] : memref<8xf32, #tpu.memory_space<smem>>
    %c1 = arith.constant 1 : index
    %1 = memref.load %arg2[%c1] : memref<8xf32, #tpu.memory_space<smem>>
    %c2 = arith.constant 2 : index
    %2 = memref.load %arg2[%c2] : memref<8xf32, #tpu.memory_space<smem>>
    %c3 = arith.constant 3 : index
    %3 = memref.load %arg2[%c3] : memref<8xf32, #tpu.memory_space<smem>>
    %c4 = arith.constant 4 : index
    %4 = memref.load %arg2[%c4] : memref<8xf32, #tpu.memory_space<smem>>
    %c5 = arith.constant 5 : index
    %5 = memref.load %arg2[%c5] : memref<8xf32, #tpu.memory_space<smem>>
    %c6 = arith.constant 6 : index
    %6 = memref.load %arg2[%c6] : memref<8xf32, #tpu.memory_space<smem>>
    %c7 = arith.constant 7 : index
    %7 = memref.load %arg2[%c7] : memref<8xf32, #tpu.memory_space<smem>>
    %8 = tpu.iota {dimensions = array<i32: 1>} : vector<2x256xi32>
    %c0_0 = arith.constant 0 : index
    %c0_1 = arith.constant 0 : index
    %9 = vector.load %arg1[%c0_0, %c0_1] : memref<2x256xf32, #tpu.memory_space<vmem>>, vector<2x256xf32>
    %10 = vector.broadcast %0 : f32 to vector<2x256xf32>
    %11 = arith.mulf %10, %9 : vector<2x256xf32>
    %12 = vector.broadcast %4 : f32 to vector<2x256xf32>
    %13 = arith.mulf %12, %9 : vector<2x256xf32>
    %c255_i32 = arith.constant 255 : i32
    %14 = tpu.dynamic_rotate %9 by %c255_i32 dim 1 : vector<2x256xf32>, i32 -> vector<2x256xf32>
    %15 = vector.broadcast %1 : f32 to vector<2x256xf32>
    %16 = arith.mulf %15, %14 : vector<2x256xf32>
    %17 = arith.addf %11, %16 : vector<2x256xf32>
    %18 = vector.broadcast %5 : f32 to vector<2x256xf32>
    %19 = arith.mulf %18, %14 : vector<2x256xf32>
    %20 = arith.addf %13, %19 : vector<2x256xf32>
    %c255_i32_2 = arith.constant 255 : i32
    %21 = tpu.dynamic_rotate %14 by %c255_i32_2 dim 1 : vector<2x256xf32>, i32 -> vector<2x256xf32>
    %22 = vector.broadcast %2 : f32 to vector<2x256xf32>
    %23 = arith.mulf %22, %21 : vector<2x256xf32>
    %24 = arith.addf %17, %23 : vector<2x256xf32>
    %25 = vector.broadcast %6 : f32 to vector<2x256xf32>
    %26 = arith.mulf %25, %21 : vector<2x256xf32>
    %27 = arith.addf %20, %26 : vector<2x256xf32>
    %c255_i32_3 = arith.constant 255 : i32
    %28 = tpu.dynamic_rotate %21 by %c255_i32_3 dim 1 : vector<2x256xf32>, i32 -> vector<2x256xf32>
    %29 = vector.broadcast %3 : f32 to vector<2x256xf32>
    %30 = arith.mulf %29, %28 : vector<2x256xf32>
    %31 = arith.addf %24, %30 : vector<2x256xf32>
    %32 = vector.broadcast %7 : f32 to vector<2x256xf32>
    %33 = arith.mulf %32, %28 : vector<2x256xf32>
    %34 = arith.addf %27, %33 : vector<2x256xf32>
    %c1_i32 = arith.constant 1 : i32
    %35 = vector.broadcast %c1_i32 : i32 to vector<2x256xi32>
    %36 = arith.andi %8, %35 : vector<2x256xi32>
    %c0_i32 = arith.constant 0 : i32
    %37 = vector.broadcast %c0_i32 : i32 to vector<2x256xi32>
    %38 = arith.cmpi ne, %36, %37 : vector<2x256xi32>
    %c1_i32_4 = arith.constant 1 : i32
    %39 = tpu.dynamic_rotate %34 by %c1_i32_4 dim 1 : vector<2x256xf32>, i32 -> vector<2x256xf32>
    %40 = arith.select %38, %39, %31 : vector<2x256xi1>, vector<2x256xf32>
    %41 = vector.broadcast %0 : f32 to vector<2x256xf32>
    %42 = arith.mulf %41, %40 : vector<2x256xf32>
    %43 = vector.broadcast %4 : f32 to vector<2x256xf32>
    %44 = arith.mulf %43, %40 : vector<2x256xf32>
    %c252_i32 = arith.constant 252 : i32
    %45 = tpu.dynamic_rotate %40 by %c252_i32 dim 1 : vector<2x256xf32>, i32 -> vector<2x256xf32>
    %46 = vector.broadcast %1 : f32 to vector<2x256xf32>
    %47 = arith.mulf %46, %45 : vector<2x256xf32>
    %48 = arith.addf %42, %47 : vector<2x256xf32>
    %49 = vector.broadcast %5 : f32 to vector<2x256xf32>
    %50 = arith.mulf %49, %45 : vector<2x256xf32>
    %51 = arith.addf %44, %50 : vector<2x256xf32>
    %c252_i32_5 = arith.constant 252 : i32
    %52 = tpu.dynamic_rotate %45 by %c252_i32_5 dim 1 : vector<2x256xf32>, i32 -> vector<2x256xf32>
    %53 = vector.broadcast %2 : f32 to vector<2x256xf32>
    %54 = arith.mulf %53, %52 : vector<2x256xf32>
    %55 = arith.addf %48, %54 : vector<2x256xf32>
    %56 = vector.broadcast %6 : f32 to vector<2x256xf32>
    %57 = arith.mulf %56, %52 : vector<2x256xf32>
    %58 = arith.addf %51, %57 : vector<2x256xf32>
    %c252_i32_6 = arith.constant 252 : i32
    %59 = tpu.dynamic_rotate %52 by %c252_i32_6 dim 1 : vector<2x256xf32>, i32 -> vector<2x256xf32>
    %60 = vector.broadcast %3 : f32 to vector<2x256xf32>
    %61 = arith.mulf %60, %59 : vector<2x256xf32>
    %62 = arith.addf %55, %61 : vector<2x256xf32>
    %63 = vector.broadcast %7 : f32 to vector<2x256xf32>
    %64 = arith.mulf %63, %59 : vector<2x256xf32>
    %65 = arith.addf %58, %64 : vector<2x256xf32>
    %c2_i32 = arith.constant 2 : i32
    %66 = vector.broadcast %c2_i32 : i32 to vector<2x256xi32>
    %67 = arith.andi %8, %66 : vector<2x256xi32>
    %c0_i32_7 = arith.constant 0 : i32
    %68 = vector.broadcast %c0_i32_7 : i32 to vector<2x256xi32>
    %69 = arith.cmpi ne, %67, %68 : vector<2x256xi32>
    %c2_i32_8 = arith.constant 2 : i32
    %70 = tpu.dynamic_rotate %65 by %c2_i32_8 dim 1 : vector<2x256xf32>, i32 -> vector<2x256xf32>
    %71 = arith.select %69, %70, %62 : vector<2x256xi1>, vector<2x256xf32>
    %72 = vector.broadcast %0 : f32 to vector<2x256xf32>
    %73 = arith.mulf %72, %71 : vector<2x256xf32>
    %74 = vector.broadcast %4 : f32 to vector<2x256xf32>
    %75 = arith.mulf %74, %71 : vector<2x256xf32>
    %c240_i32 = arith.constant 240 : i32
    %76 = tpu.dynamic_rotate %71 by %c240_i32 dim 1 : vector<2x256xf32>, i32 -> vector<2x256xf32>
    %77 = vector.broadcast %1 : f32 to vector<2x256xf32>
    %78 = arith.mulf %77, %76 : vector<2x256xf32>
    %79 = arith.addf %73, %78 : vector<2x256xf32>
    %80 = vector.broadcast %5 : f32 to vector<2x256xf32>
    %81 = arith.mulf %80, %76 : vector<2x256xf32>
    %82 = arith.addf %75, %81 : vector<2x256xf32>
    %c240_i32_9 = arith.constant 240 : i32
    %83 = tpu.dynamic_rotate %76 by %c240_i32_9 dim 1 : vector<2x256xf32>, i32 -> vector<2x256xf32>
    %84 = vector.broadcast %2 : f32 to vector<2x256xf32>
    %85 = arith.mulf %84, %83 : vector<2x256xf32>
    %86 = arith.addf %79, %85 : vector<2x256xf32>
    %87 = vector.broadcast %6 : f32 to vector<2x256xf32>
    %88 = arith.mulf %87, %83 : vector<2x256xf32>
    %89 = arith.addf %82, %88 : vector<2x256xf32>
    %c240_i32_10 = arith.constant 240 : i32
    %90 = tpu.dynamic_rotate %83 by %c240_i32_10 dim 1 : vector<2x256xf32>, i32 -> vector<2x256xf32>
    %91 = vector.broadcast %3 : f32 to vector<2x256xf32>
    %92 = arith.mulf %91, %90 : vector<2x256xf32>
    %93 = arith.addf %86, %92 : vector<2x256xf32>
    %94 = vector.broadcast %7 : f32 to vector<2x256xf32>
    %95 = arith.mulf %94, %90 : vector<2x256xf32>
    %96 = arith.addf %89, %95 : vector<2x256xf32>
    %c4_i32 = arith.constant 4 : i32
    %97 = vector.broadcast %c4_i32 : i32 to vector<2x256xi32>
    %98 = arith.andi %8, %97 : vector<2x256xi32>
    %c0_i32_11 = arith.constant 0 : i32
    %99 = vector.broadcast %c0_i32_11 : i32 to vector<2x256xi32>
    %100 = arith.cmpi ne, %98, %99 : vector<2x256xi32>
    %c4_i32_12 = arith.constant 4 : i32
    %101 = tpu.dynamic_rotate %96 by %c4_i32_12 dim 1 : vector<2x256xf32>, i32 -> vector<2x256xf32>
    %102 = arith.select %100, %101, %93 : vector<2x256xi1>, vector<2x256xf32>
    %103 = vector.broadcast %0 : f32 to vector<2x256xf32>
    %104 = arith.mulf %103, %102 : vector<2x256xf32>
    %105 = vector.broadcast %4 : f32 to vector<2x256xf32>
    %106 = arith.mulf %105, %102 : vector<2x256xf32>
    %c192_i32 = arith.constant 192 : i32
    %107 = tpu.dynamic_rotate %102 by %c192_i32 dim 1 : vector<2x256xf32>, i32 -> vector<2x256xf32>
    %108 = vector.broadcast %1 : f32 to vector<2x256xf32>
    %109 = arith.mulf %108, %107 : vector<2x256xf32>
    %110 = arith.addf %104, %109 : vector<2x256xf32>
    %111 = vector.broadcast %5 : f32 to vector<2x256xf32>
    %112 = arith.mulf %111, %107 : vector<2x256xf32>
    %113 = arith.addf %106, %112 : vector<2x256xf32>
    %c192_i32_13 = arith.constant 192 : i32
    %114 = tpu.dynamic_rotate %107 by %c192_i32_13 dim 1 : vector<2x256xf32>, i32 -> vector<2x256xf32>
    %115 = vector.broadcast %2 : f32 to vector<2x256xf32>
    %116 = arith.mulf %115, %114 : vector<2x256xf32>
    %117 = arith.addf %110, %116 : vector<2x256xf32>
    %118 = vector.broadcast %6 : f32 to vector<2x256xf32>
    %119 = arith.mulf %118, %114 : vector<2x256xf32>
    %120 = arith.addf %113, %119 : vector<2x256xf32>
    %c192_i32_14 = arith.constant 192 : i32
    %121 = tpu.dynamic_rotate %114 by %c192_i32_14 dim 1 : vector<2x256xf32>, i32 -> vector<2x256xf32>
    %122 = vector.broadcast %3 : f32 to vector<2x256xf32>
    %123 = arith.mulf %122, %121 : vector<2x256xf32>
    %124 = arith.addf %117, %123 : vector<2x256xf32>
    %125 = vector.broadcast %7 : f32 to vector<2x256xf32>
    %126 = arith.mulf %125, %121 : vector<2x256xf32>
    %127 = arith.addf %120, %126 : vector<2x256xf32>
    %c8_i32 = arith.constant 8 : i32
    %128 = vector.broadcast %c8_i32 : i32 to vector<2x256xi32>
    %129 = arith.andi %8, %128 : vector<2x256xi32>
    %c0_i32_15 = arith.constant 0 : i32
    %130 = vector.broadcast %c0_i32_15 : i32 to vector<2x256xi32>
    %131 = arith.cmpi ne, %129, %130 : vector<2x256xi32>
    %c8_i32_16 = arith.constant 8 : i32
    %132 = tpu.dynamic_rotate %127 by %c8_i32_16 dim 1 : vector<2x256xf32>, i32 -> vector<2x256xf32>
    %133 = arith.select %131, %132, %124 : vector<2x256xi1>, vector<2x256xf32>
    %134 = vector.extract_strided_slice %133 {offsets = [0, 0], sizes = [2, 128], strides = [1, 1]} : vector<2x256xf32> to vector<2x128xf32>
    %c0_17 = arith.constant 0 : index
    %c0_18 = arith.constant 0 : index
    %135 = vector.load %arg3[%c0_17, %c0_18] : memref<2x128xf32, #tpu.memory_space<vmem>>, vector<2x128xf32>
    tpu.vector_store %arg3[%c0_17, %c0_18], %134 {strides = array<i32>} : memref<2x128xf32, #tpu.memory_space<vmem>>, vector<2x128xf32>,
    return
  }
  func.func @transform_0(%arg0: i32) -> (i32, i32) {
    %c0_i32 = arith.constant 0 : i32
    %c0_i32_0 = arith.constant 0 : i32
    return %arg0, %c0_i32 : i32, i32
  }
  func.func @transform_1(%arg0: i32) -> i32 {
    %c0_i32 = arith.constant 0 : i32
    %c0_i32_0 = arith.constant 0 : i32
    return %c0_i32 : i32
  }
  func.func @transform_2(%arg0: i32) -> (i32, i32) {
    %c0_i32 = arith.constant 0 : i32
    %c0_i32_0 = arith.constant 0 : i32
    return %arg0, %c0_i32 : i32, i32
  }
}

</mosaic_0001>

<llo_original>
// kernel: cnndst_forward.1
$region0: #{cnndst_forward.1}
  #allocation0 [shape = 'u32[]', space=smem, size = 0x4, offset = 0x4, fixed_abs, tag = 'smem constant byte address 0x4 - core index']
  #allocation1 [shape = 'u32[144,128]{1,0:T(1,128)}', space=vmem, size = 0x12000, scoped, tag = 'internal scratch']
  %s0 = inlined_call_operand.vmem [shape: f32[2,256], index: 0, kind: input, shape index: {}]
  %s1 = inlined_call_operand.vmem [shape: f32[8], index: 1, kind: input, shape index: {}]
  %s2 = inlined_call_operand.hbm [shape: f32[2,128], index: 2, kind: output, shape index: {}]
  %s3 = sld [smem:[#allocation0]]
  $region22: #{cnndst_forward.1} parent=0
    _
  %s5 = ssub.s32 1, %s3
  %s6 = scalar_select 0, %s5, %s3
  $region1: #{cnndst_forward.1} parent=0
    #allocation2 [shape = 'u8[512]{0}', space=smem, size = 0x200, scoped, tag = 'input window, operand 1, single buffered']
    #allocation3 [shape = 's32[1]{0}', space=sflag, size = 0x4, scoped, tag = 'scoped memory for cnndst_forward.1']
    #allocation4 [shape = 's32[1]{0}', space=sflag, size = 0x4, scoped, tag = 'scoped memory for cnndst_forward.1']
    #allocation5 [shape = 'u8[1024]{0}', space=vmem, size = 0x400, scoped, tag = 'output window, operand 0, single buffered']
    %7 = vsyncpa [#allocation4], 0
    %8 = vsyncpa [#allocation3], 0
    // Predicated region
    $region2: #{cnndst_forward.1} parent=1 // pred_check
      _
    $region3: #{cnndst_forward.1} parent=1 // pred_check_branch
      %10 = sbr.rel (0) target = $region5
    $region4: #{cnndst_forward.1} parent=1 // pred_region
      _
    $region5: #{cnndst_forward.1} parent=1 // pred_fallthru
      _
    // Predicated region
    $region6: #{cnndst_forward.1} parent=1 // pred_check
      _
    $region7: #{cnndst_forward.1} parent=1 // pred_check_branch
      %12 = sbr.rel (0) target = $region9
    $region8: #{cnndst_forward.1} parent=1 // pred_region
      %s14 = ssub.s32 16, 16
      %15 = vsyncadd [#allocation4], %s14
      %s17 = sshll.u32 %s1, 4
      %s18 = int_to_ptr.vmem [resolvable:$true] %s17
      %20 = dma.vmem_to_smem %s18, 16, [#allocation2], [#allocation4]
    $region9: #{cnndst_forward.1} parent=1 // pred_fallthru
      _
    // Predicated region
    $region10: #{cnndst_forward.1} parent=1 // pred_check
      _
    $region11: #{cnndst_forward.1} parent=1 // pred_check_branch
      %22 = sbr.rel (0) target = $region13
    $region12: #{cnndst_forward.1} parent=1 // pred_region
      %23 = dma.done [#allocation4], 16
    $region13: #{cnndst_forward.1} parent=1 // pred_fallthru
      _
    %24 = sfence
    %s25 = sld [smem:[#allocation2]]
    %s26 = sld [smem:[#allocation2 + $0x1]]
    %s27 = sld [smem:[#allocation2 + $0x2]]
    %s28 = sld [smem:[#allocation2 + $0x3]]
    %s29 = sld [smem:[#allocation2 + $0x4]]
    %s30 = sld [smem:[#allocation2 + $0x5]]
    %s31 = sld [smem:[#allocation2 + $0x6]]
    %s32 = sld [smem:[#allocation2 + $0x7]]
    %v33 = vlaneseq
    %v34 = vand.u32 %v33, 127
    %v35 = vadd.s32 %v34, 128
    %v36 = vld [vmem:[%s0] sm:$0xf]
    %v37 = vstv %s25
    %v38 = vmul.f32 %v37, %v36
    %v39 = vstv %s29
    %v40 = vmul.f32 %v39, %v36
    %v43 = vunpack.c.l.s4 1983009808
    %v44 = vunpack.c.0.s8 %v43
    %v45 = vlaneseq
    %v46 = vshrl.u32 %v45, 7
    %v47 = vsub.s32 %v44, %v46
    %v48 = vrot.slane %v36, %v47
    %v49 = vcombine.high %v48, %v48
    %52 = vrot.lane.b32.xlu0 %v48, 127
    %v53 = vpop.permute.xlu0 %52
    %54 = vrot.lane.b32.xlu0 %v49, 127
    %v55 = vpop.permute.xlu0 %54
    %vm56 = vcmp.lt.s32.totalorder %v34, 127
    %v57 = vsel %vm56, %v53, %v55
    %v58 = vsel %vm56, %v55, %v53
    %v59 = vstv %s26
    %v60 = vmul.f32 %v59, %v57
    %v61 = vmul.f32 %v59, %v58
    %v64 = vcombine.low %v60, %v61
    %v66 = vunpack.c.l.s4 1983009808
    %v67 = vunpack.c.0.s8 %v66
    %v68 = vlaneseq
    %v69 = vshrl.u32 %v68, 7
    %v70 = vsub.s32 %v67, %v69
    %v71 = vrot.slane %v64, %v70
    %v73 = vadd.f32 %v38, %v71
    %v74 = vstv %s30
    %v75 = vmul.f32 %v74, %v57
    %v76 = vmul.f32 %v74, %v58
    %v79 = vcombine.low %v75, %v76
    %v81 = vunpack.c.l.s4 1983009808
    %v82 = vunpack.c.0.s8 %v81
    %v83 = vlaneseq
    %v84 = vshrl.u32 %v83, 7
    %v85 = vsub.s32 %v82, %v84
    %v86 = vrot.slane %v79, %v85
    %v88 = vadd.f32 %v40, %v86
    %89 = vrot.lane.b32.xlu0 %v57, 127
    %v90 = vpop.permute.xlu0 %89
    %91 = vrot.lane.b32.xlu0 %v58, 127
    %v92 = vpop.permute.xlu0 %91
    %v93 = vsel %vm56, %v90, %v92
    %v94 = vsel %vm56, %v92, %v90
    %v95 = vstv %s27
    %v96 = vmul.f32 %v95, %v93
    %v97 = vmul.f32 %v95, %v94
    %v100 = vcombine.low %v96, %v97
    %v102 = vunpack.c.l.s4 1983009808
    %v103 = vunpack.c.0.s8 %v102
    %v104 = vlaneseq
    %v105 = vshrl.u32 %v104, 7
    %v106 = vsub.s32 %v103, %v105
    %v107 = vrot.slane %v100, %v106
    %v109 = vadd.f32 %v73, %v107
    %v110 = vstv %s31
    %v111 = vmul.f32 %v110, %v93
    %v112 = vmul.f32 %v110, %v94
    %v115 = vcombine.low %v111, %v112
    %v117 = vunpack.c.l.s4 1983009808
    %v118 = vunpack.c.0.s8 %v117
    %v119 = vlaneseq
    %v120 = vshrl.u32 %v119, 7
    %v121 = vsub.s32 %v118, %v120
    %v122 = vrot.slane %v115, %v121
    %v124 = vadd.f32 %v88, %v122
    %125 = vrot.lane.b32.xlu0 %v93, 127
    %v126 = vpop.permute.xlu0 %125
    %127 = vrot.lane.b32.xlu0 %v94, 127
    %v128 = vpop.permute.xlu0 %127
    %v129 = vsel %vm56, %v126, %v128
    %v130 = vsel %vm56, %v128, %v126
    %v131 = vstv %s28
    %v132 = vmul.f32 %v131, %v129
    %v133 = vmul.f32 %v131, %v130
    %v136 = vcombine.low %v132, %v133
    %v138 = vunpack.c.l.s4 1983009808
    %v139 = vunpack.c.0.s8 %v138
    %v140 = vlaneseq
    %v141 = vshrl.u32 %v140, 7
    %v142 = vsub.s32 %v139, %v141
    %v143 = vrot.slane %v136, %v142
    %v145 = vadd.f32 %v109, %v143
    %v146 = vstv %s32
    %v147 = vmul.f32 %v146, %v129
    %v148 = vmul.f32 %v146, %v130
    %v151 = vcombine.low %v147, %v148
    %v153 = vunpack.c.l.s4 1983009808
    %v154 = vunpack.c.0.s8 %v153
    %v155 = vlaneseq
    %v156 = vshrl.u32 %v155, 7
    %v157 = vsub.s32 %v154, %v156
    %v158 = vrot.slane %v151, %v157
    %v160 = vadd.f32 %v124, %v158
    %v161 = vand.u32 %v34, 1
    %v162 = vand.u32 %v35, 1
    %vm163 = vcmp.ne.s32.totalorder %v161, 0
    %vm164 = vcmp.ne.s32.totalorder %v162, 0
    %v167 = vunpack.c.l.s4 1983009808
    %v168 = vunpack.c.0.s8 %v167
    %v169 = vlaneseq
    %v170 = vshrl.u32 %v169, 7
    %v171 = vsub.s32 %v168, %v170
    %v172 = vrot.slane %v160, %v171
    %v173 = vcombine.high %v172, %v172
    %176 = vrot.lane.b32.xlu0 %v172, 1
    %v177 = vpop.permute.xlu0 %176
    %178 = vrot.lane.b32.xlu0 %v173, 1
    %v179 = vpop.permute.xlu0 %178
    %vm180 = vcmp.lt.s32.totalorder %v34, 1
    %v181 = vsel %vm180, %v177, %v179
    %v182 = vsel %vm180, %v179, %v177
    %v185 = vunpack.c.l.s4 1983009808
    %v186 = vunpack.c.0.s8 %v185
    %v187 = vlaneseq
    %v188 = vshrl.u32 %v187, 7
    %v189 = vsub.s32 %v186, %v188
    %v190 = vrot.slane %v145, %v189
    %v191 = vcombine.high %v190, %v190
    %v194 = vsel %vm163, %v182, %v190
    %v195 = vsel %vm164, %v181, %v191
    %v196 = vmul.f32 %v37, %v194
    %v197 = vmul.f32 %v37, %v195
    %v198 = vmul.f32 %v39, %v194
    %v199 = vmul.f32 %v39, %v195
    %200 = vrot.lane.b32.xlu0 %v194, 124
    %v201 = vpop.permute.xlu0 %200
    %202 = vrot.lane.b32.xlu0 %v195, 124
    %v203 = vpop.permute.xlu0 %202
    %vm204 = vcmp.lt.s32.totalorder %v34, 124
    %v205 = vsel %vm204, %v201, %v203
    %v206 = vsel %vm204, %v203, %v201
    %v207 = vmul.f32 %v59, %v205
    %v208 = vmul.f32 %v59, %v206
    %v209 = vadd.f32 %v196, %v207
    %v210 = vadd.f32 %v197, %v208
    %v211 = vmul.f32 %v74, %v205
    %v212 = vmul.f32 %v74, %v206
    %v213 = vadd.f32 %v198, %v211
    %v214 = vadd.f32 %v199, %v212
    %215 = vrot.lane.b32.xlu0 %v205, 124
    %v216 = vpop.permute.xlu0 %215
    %217 = vrot.lane.b32.xlu0 %v206, 124
    %v218 = vpop.permute.xlu0 %217
    %v219 = vsel %vm204, %v216, %v218
    %v220 = vsel %vm204, %v218, %v216
    %v221 = vmul.f32 %v95, %v219
    %v222 = vmul.f32 %v95, %v220
    %v223 = vadd.f32 %v209, %v221
    %v224 = vadd.f32 %v210, %v222
    %v225 = vmul.f32 %v110, %v219
    %v226 = vmul.f32 %v110, %v220
    %v227 = vadd.f32 %v213, %v225
    %v228 = vadd.f32 %v214, %v226
    %229 = vrot.lane.b32.xlu0 %v219, 124
    %v230 = vpop.permute.xlu0 %229
    %231 = vrot.lane.b32.xlu0 %v220, 124
    %v232 = vpop.permute.xlu0 %231
    %v233 = vsel %vm204, %v230, %v232
    %v234 = vsel %vm204, %v232, %v230
    %v235 = vmul.f32 %v131, %v233
    %v236 = vmul.f32 %v131, %v234
    %v237 = vadd.f32 %v223, %v235
    %v238 = vadd.f32 %v224, %v236
    %v239 = vmul.f32 %v146, %v233
    %v240 = vmul.f32 %v146, %v234
    %v241 = vadd.f32 %v227, %v239
    %v242 = vadd.f32 %v228, %v240
    %v243 = vand.u32 %v34, 2
    %v244 = vand.u32 %v35, 2
    %vm245 = vcmp.ne.s32.totalorder %v243, 0
    %vm246 = vcmp.ne.s32.totalorder %v244, 0
    %247 = vrot.lane.b32.xlu0 %v241, 2
    %v248 = vpop.permute.xlu0 %247
    %249 = vrot.lane.b32.xlu0 %v242, 2
    %v250 = vpop.permute.xlu0 %249
    %vm251 = vcmp.lt.s32.totalorder %v34, 2
    %v252 = vsel %vm251, %v248, %v250
    %v253 = vsel %vm251, %v250, %v248
    %v254 = vsel %vm245, %v253, %v237
    %v255 = vsel %vm246, %v252, %v238
    %v256 = vmul.f32 %v37, %v254
    %v257 = vmul.f32 %v37, %v255
    %v258 = vmul.f32 %v39, %v254
    %v259 = vmul.f32 %v39, %v255
    %260 = vrot.lane.b32.xlu0 %v254, 112
    %v261 = vpop.permute.xlu0 %260
    %262 = vrot.lane.b32.xlu0 %v255, 112
    %v263 = vpop.permute.xlu0 %262
    %vm264 = vcmp.lt.s32.totalorder %v34, 112
    %v265 = vsel %vm264, %v261, %v263
    %v266 = vsel %vm264, %v263, %v261
    %v267 = vmul.f32 %v59, %v265
    %v268 = vmul.f32 %v59, %v266
    %v269 = vadd.f32 %v256, %v267
    %v270 = vadd.f32 %v257, %v268
    %v271 = vmul.f32 %v74, %v265
    %v272 = vmul.f32 %v74, %v266
    %v273 = vadd.f32 %v258, %v271
    %v274 = vadd.f32 %v259, %v272
    %275 = vrot.lane.b32.xlu0 %v265, 112
    %v276 = vpop.permute.xlu0 %275
    %277 = vrot.lane.b32.xlu0 %v266, 112
    %v278 = vpop.permute.xlu0 %277
    %v279 = vsel %vm264, %v276, %v278
    %v280 = vsel %vm264, %v278, %v276
    %v281 = vmul.f32 %v95, %v279
    %v282 = vmul.f32 %v95, %v280
    %v283 = vadd.f32 %v269, %v281
    %v284 = vadd.f32 %v270, %v282
    %v285 = vmul.f32 %v110, %v279
    %v286 = vmul.f32 %v110, %v280
    %v287 = vadd.f32 %v273, %v285
    %v288 = vadd.f32 %v274, %v286
    %289 = vrot.lane.b32.xlu0 %v279, 112
    %v290 = vpop.permute.xlu0 %289
    %291 = vrot.lane.b32.xlu0 %v280, 112
    %v292 = vpop.permute.xlu0 %291
    %v293 = vsel %vm264, %v290, %v292
    %v294 = vsel %vm264, %v292, %v290
    %v295 = vmul.f32 %v131, %v293
    %v296 = vmul.f32 %v131, %v294
    %v297 = vadd.f32 %v283, %v295
    %v298 = vadd.f32 %v284, %v296
    %v299 = vmul.f32 %v146, %v293
    %v300 = vmul.f32 %v146, %v294
    %v301 = vadd.f32 %v287, %v299
    %v302 = vadd.f32 %v288, %v300
    %v303 = vand.u32 %v34, 4
    %v304 = vand.u32 %v35, 4
    %vm305 = vcmp.ne.s32.totalorder %v303, 0
    %vm306 = vcmp.ne.s32.totalorder %v304, 0
    %307 = vrot.lane.b32.xlu0 %v301, 4
    %v308 = vpop.permute.xlu0 %307
    %309 = vrot.lane.b32.xlu0 %v302, 4
    %v310 = vpop.permute.xlu0 %309
    %vm311 = vcmp.lt.s32.totalorder %v34, 4
    %v312 = vsel %vm311, %v308, %v310
    %v313 = vsel %vm311, %v310, %v308
    %v314 = vsel %vm305, %v313, %v297
    %v315 = vsel %vm306, %v312, %v298
    %v316 = vmul.f32 %v37, %v314
    %v317 = vmul.f32 %v39, %v314
    %v318 = vmul.f32 %v39, %v315
    %319 = vrot.lane.b32.xlu0 %v314, 64
    %v320 = vpop.permute.xlu0 %319
    %321 = vrot.lane.b32.xlu0 %v315, 64
    %v322 = vpop.permute.xlu0 %321
    %vm323 = vcmp.lt.s32.totalorder %v34, 64
    %v324 = vsel %vm323, %v320, %v322
    %v325 = vsel %vm323, %v322, %v320
    %v326 = vmul.f32 %v59, %v324
    %v327 = vadd.f32 %v316, %v326
    %v328 = vmul.f32 %v74, %v324
    %v329 = vmul.f32 %v74, %v325
    %v330 = vadd.f32 %v317, %v328
    %v331 = vadd.f32 %v318, %v329
    %332 = vrot.lane.b32.xlu0 %v324, 64
    %v333 = vpop.permute.xlu0 %332
    %334 = vrot.lane.b32.xlu0 %v325, 64
    %v335 = vpop.permute.xlu0 %334
    %v336 = vsel %vm323, %v333, %v335
    %v337 = vsel %vm323, %v335, %v333
    %v338 = vmul.f32 %v95, %v336
    %v339 = vadd.f32 %v327, %v338
    %v340 = vmul.f32 %v110, %v336
    %v341 = vmul.f32 %v110, %v337
    %v342 = vadd.f32 %v330, %v340
    %v343 = vadd.f32 %v331, %v341
    %344 = vrot.lane.b32.xlu0 %v336, 64
    %v345 = vpop.permute.xlu0 %344
    %346 = vrot.lane.b32.xlu0 %v337, 64
    %v347 = vpop.permute.xlu0 %346
    %v348 = vsel %vm323, %v345, %v347
    %v349 = vsel %vm323, %v347, %v345
    %v350 = vmul.f32 %v131, %v348
    %v351 = vadd.f32 %v339, %v350
    %v352 = vmul.f32 %v146, %v348
    %v353 = vmul.f32 %v146, %v349
    %v354 = vadd.f32 %v342, %v352
    %v355 = vadd.f32 %v343, %v353
    %v356 = vand.u32 %v34, 8
    %vm357 = vcmp.ne.s32.totalorder %v356, 0
    %358 = vrot.lane.b32.xlu0 %v354, 8
    %v359 = vpop.permute.xlu0 %358
    %360 = vrot.lane.b32.xlu0 %v355, 8
    %v361 = vpop.permute.xlu0 %360
    %vm362 = vcmp.lt.s32.totalorder %v34, 8
    %v363 = vsel %vm362, %v361, %v359
    %v364 = vsel %vm357, %v363, %v351
    %365 = vst [vmem:[#allocation5] sm:$0x3] %v364
    // Predicated region
    $region14: #{cnndst_forward.1} parent=1 // pred_check
      _
    $region15: #{cnndst_forward.1} parent=1 // pred_check_branch
      %367 = sbr.rel (0) target = $region17
    $region16: #{cnndst_forward.1} parent=1 // pred_region
      %s369 = ssub.s32 32, 32
      %370 = vsyncadd [#allocation3], %s369
      %s372 = sshll.u32 [#allocation5], 4
      %s373 = int_to_ptr.vmem [resolvable:$true] %s372
      %375 = dma.vmem_to_hbm [thread:$0]  %s373, 32, %s2, [#allocation3]
    $region17: #{cnndst_forward.1} parent=1 // pred_fallthru
      _
    // Predicated region
    $region18: #{cnndst_forward.1} parent=1 // pred_check
      _
    $region19: #{cnndst_forward.1} parent=1 // pred_check_branch
      %377 = sbr.rel (0) target = $region21
    $region20: #{cnndst_forward.1} parent=1 // pred_region
      %378 = dma.done [#allocation3], 32
    $region21: #{cnndst_forward.1} parent=1 // pred_fallthru
      _
    %379 = vsyncpa [#allocation3], 1
    %380 = vsyncpa [#allocation4], 1

</llo_original>
